<compile_context>
chip_gen: v6e
topology: v6e:2x2x1
jax: 0.10.0
libtpu: 0.0.40
codegen_flags: <defaults>
</compile_context>

<pallas_src>
import jax
import jax.numpy as jnp
from jax.experimental import pallas as pl
from jax.experimental.pallas import tpu as pltpu


def _gnn_encoder_kernel(x_ref, aggm_ref, w1_ref, b1_ref, w2_ref, b2_ref, o_ref):
    """One batch-chunk: R = Bb*N node rows (whole graphs only)."""
    x = x_ref[...]                                    # (R, F_in)   f32
    aggm = aggm_ref[...]                              # (R, R)      block-diag mean-agg

    # ---- SAGEConv 1 (+ relu) ----
    agg1 = jnp.dot(aggm, x, preferred_element_type=jnp.float32)        # (R, F_in)
    z1 = jnp.concatenate([agg1, x], axis=-1)                           # (R, 2*F_in)
    h = jnp.dot(z1, w1_ref[...], preferred_element_type=jnp.float32) + b1_ref[...]
    h = jnp.maximum(h, 0.0)                                            # (R, H)

    # ---- SAGEConv 2 ----
    agg2 = jnp.dot(aggm, h, preferred_element_type=jnp.float32)        # (R, H)
    z2 = jnp.concatenate([agg2, h], axis=-1)                           # (R, 2*H)
    out = jnp.dot(z2, w2_ref[...], preferred_element_type=jnp.float32) + b2_ref[...]
    o_ref[...] = out.astype(o_ref.dtype)                               # (R, F_out)


def _pick_batch_block(batch, n_nodes, row_target=256):
    """Largest Bb dividing `batch` with Bb*N a multiple of 8 and <= row_target.

    row_target=256 fills a full MXU pass on v6e/v7x (two on v5e) while keeping
    each block tiny vs VMEM (well under the 64 MiB v7x limit, double-buffered).
    Falls back to the whole batch (block == full array is always legal).
    """
    best = None
    for bb in range(1, batch + 1):
        rows = bb * n_nodes
        if batch % bb == 0 and rows % 8 == 0 and rows <= row_target:
            best = bb
    return best if best is not None else batch


@jax.jit
def gnn_encoder_forward(x, params):
    """x: (N, F_in) or (B, N, F_in).  Returns same leading shape with F_out."""
    w1l, w1r, b1, w2l, w2r, b2 = params
    squeeze = x.ndim == 2
    if squeeze:
        x = x[None]
    B, N, F_in = x.shape
    H = w1l.shape[1]
    F_out = w2l.shape[1]
    if N < 2:
        raise ValueError("GNNEncoder needs >= 2 nodes: the fully-connected "
                         "graph without self-loops averages over N-1 neighbors.")

    Bb = _pick_batch_block(B, N)
    R = Bb * N
    num_blocks = B // Bb

    # Block-diagonal neighbor-mean operator for one chunk of Bb whole graphs.
    agg_n = (jnp.ones((N, N), jnp.float32) - jnp.eye(N, dtype=jnp.float32)) / (N - 1)
    aggm = jnp.kron(jnp.eye(Bb, dtype=jnp.float32), agg_n)              # (R, R)

    # Stack weights so each layer is a single [agg | x] @ [W_l; W_r] matmul.
    w1 = jnp.concatenate([w1l, w1r], axis=0)                            # (2*F_in, H)
    w2 = jnp.concatenate([w2l, w2r], axis=0)                            # (2*H, F_out)

    x_flat = x.reshape(B * N, F_in)

    const = lambda shape: pl.BlockSpec(shape, lambda i: (0,) * len(shape))

    out_flat = pl.pallas_call(
        _gnn_encoder_kernel,
        out_shape=jax.ShapeDtypeStruct((B * N, F_out), jnp.float32),
        grid_spec=pl.GridSpec(
            grid=(num_blocks,),
            in_specs=[
                pl.BlockSpec((R, F_in), lambda i: (i, 0)),   # x rows, chunked
                const((R, R)),                               # aggm   (resident)
                const((2 * F_in, H)),                        # W1     (resident)
                const((1, H)),                               # b1     (resident)
                const((2 * H, F_out)),                       # W2     (resident)
                const((1, F_out)),                           # b2     (resident)
            ],
            out_specs=pl.BlockSpec((R, F_out), lambda i: (i, 0)),
        ),
        compiler_params=pltpu.CompilerParams(
            dimension_semantics=("parallel",)),
    )(x_flat, aggm, w1, b1, w2, b2)

    out = out_flat.reshape(B, N, F_out)
    return out[0] if squeeze else out


def init_params(key, n_xdims, hidden):
    """Deterministic synthetic parameters.  Weights stored as (in, out)."""
    k = jax.random.split(key, 6)
    scale1 = 1.0 / jnp.sqrt(n_xdims)
    scale2 = 1.0 / jnp.sqrt(hidden)
    w1l = jax.random.uniform(k[0], (n_xdims, hidden), jnp.float32, -scale1, scale1)
    w1r = jax.random.uniform(k[1], (n_xdims, hidden), jnp.float32, -scale1, scale1)
    b1 = jax.random.uniform(k[2], (1, hidden), jnp.float32, -scale1, scale1)
    w2l = jax.random.uniform(k[3], (hidden, n_xdims), jnp.float32, -scale2, scale2)
    w2r = jax.random.uniform(k[4], (hidden, n_xdims), jnp.float32, -scale2, scale2)
    b2 = jax.random.uniform(k[5], (1, n_xdims), jnp.float32, -scale2, scale2)
    return (w1l, w1r, b1, w2l, w2r, b2)


def _reference_forward(x, params):
    """Pure-JAX reference of the same math (for a correctness check)."""
    w1l, w1r, b1, w2l, w2r, b2 = params
    if x.ndim == 2:
        x = x[None]
        squeeze = True
    else:
        squeeze = False
    n = x.shape[1]
    agg1 = (jnp.sum(x, axis=1, keepdims=True) - x) / (n - 1)
    h = jax.nn.relu(agg1 @ w1l + x @ w1r + b1)
    agg2 = (jnp.sum(h, axis=1, keepdims=True) - h) / (n - 1)
    out = agg2 @ w2l + h @ w2r + b2
    return out[0] if squeeze else out


if __name__ == "__main__":
    # Shapes consistent with the module:
    #   node_num = 8, n_xdims = 32, n_actions = 4, num_agents = 4
    #   -> hidden = n_actions * num_agents = 16, batch = 2.
    node_num = 8
    n_xdims = 32
    n_actions = 4
    num_agents = 4
    hidden = n_actions * num_agents
    batch = 2

    key = jax.random.PRNGKey(0)
    kp, kx, kxb = jax.random.split(key, 3)
    params = init_params(kp, n_xdims, hidden)

    # 3-D input path (len(x.shape)==3 branch of the torch module).
    x3 = jax.random.normal(kx, (batch, node_num, n_xdims), jnp.float32)
    out3 = jax.block_until_ready(gnn_encoder_forward(x3, params))

    # 2-D input path (len(x.shape)==2 branch).
    x2 = x3[0]
    out2 = jax.block_until_ready(gnn_encoder_forward(x2, params))

    # Larger batch exercising the multi-step (batch-chunked) grid path.
    xb = jax.random.normal(kxb, (64, node_num, n_xdims), jnp.float32)
    outb = jax.block_until_ready(gnn_encoder_forward(xb, params))

    ref3 = _reference_forward(x3, params)
    ref2 = _reference_forward(x2, params)
    refb = _reference_forward(xb, params)
    assert out3.shape == (batch, node_num, n_xdims)
    assert out2.shape == (node_num, n_xdims)
    assert outb.shape == (64, node_num, n_xdims)
    assert jnp.allclose(out3, ref3, atol=1e-4, rtol=1e-4)
    assert jnp.allclose(out2, ref2, atol=1e-4, rtol=1e-4)
    assert jnp.allclose(outb, refb, atol=1e-4, rtol=1e-4)

    print("KERNEL_OK")
</pallas_src>

<mosaic_0001>
module attributes {stable_mosaic.version = 11 : i64} {
  func.func @_gnn_encoder_kernel(%arg0: i32, %arg1: memref<16x32xf32, #tpu.memory_space<vmem>>, %arg2: memref<16x16xf32, #tpu.memory_space<vmem>>, %arg3: memref<64x16xf32, #tpu.memory_space<vmem>>, %arg4: memref<1x16xf32, #tpu.memory_space<vmem>>, %arg5: memref<32x32xf32, #tpu.memory_space<vmem>>, %arg6: memref<1x32xf32, #tpu.memory_space<vmem>>, %arg7: memref<16x32xf32, #tpu.memory_space<vmem>>) attributes {dimension_semantics = [#tpu.dimension_semantics<parallel>], iteration_bounds = array<i64: 1>, scalar_prefetch = 0 : i64, scratch_operands = 0 : i64, tpu.core_type = #tpu.core_type<tc>, window_params = [{transform_indices = @transform_0, window_bounds = array<i64: 16, 32>}, {pipeline_mode = #tpu.pipeline_mode<synchronous>, transform_indices = @transform_1, window_bounds = array<i64: 16, 16>}, {pipeline_mode = #tpu.pipeline_mode<synchronous>, transform_indices = @transform_2, window_bounds = array<i64: 64, 16>}, {pipeline_mode = #tpu.pipeline_mode<synchronous>, transform_indices = @transform_3, window_bounds = array<i64: 1, 16>}, {pipeline_mode = #tpu.pipeline_mode<synchronous>, transform_indices = @transform_4, window_bounds = array<i64: 32, 32>}, {pipeline_mode = #tpu.pipeline_mode<synchronous>, transform_indices = @transform_5, window_bounds = array<i64: 1, 32>}, {transform_indices = @transform_6, window_bounds = array<i64: 16, 32>}]} {
    %c0 = arith.constant 0 : index
    %c0_0 = arith.constant 0 : index
    %0 = vector.load %arg1[%c0, %c0_0] : memref<16x32xf32, #tpu.memory_space<vmem>>, vector<16x32xf32>
    %c0_1 = arith.constant 0 : index
    %c0_2 = arith.constant 0 : index
    %1 = vector.load %arg2[%c0_1, %c0_2] : memref<16x16xf32, #tpu.memory_space<vmem>>, vector<16x16xf32>
    %cst = arith.constant dense<0.000000e+00> : vector<16x32xf32>
    %2 = tpu.matmul %1, %0, %cst {dimension_numbers = #tpu.dot_dimension_numbers<[1], [0], [0], [1], [0, 0, 1, 1], [], []>} : vector<16x16xf32>, vector<16x32xf32>, vector<16x32xf32> -> vector<16x32xf32>
    %3 = tpu.concatenate %2, %0 in 1 : vector<16x32xf32>, vector<16x32xf32> -> vector<16x64xf32>
    %c0_3 = arith.constant 0 : index
    %c0_4 = arith.constant 0 : index
    %4 = vector.load %arg3[%c0_3, %c0_4] : memref<64x16xf32, #tpu.memory_space<vmem>>, vector<64x16xf32>
    %cst_5 = arith.constant dense<0.000000e+00> : vector<16x16xf32>
    %5 = tpu.matmul %3, %4, %cst_5 {dimension_numbers = #tpu.dot_dimension_numbers<[1], [0], [0], [1], [0, 0, 1, 1], [], []>} : vector<16x64xf32>, vector<64x16xf32>, vector<16x16xf32> -> vector<16x16xf32>
    %c0_6 = arith.constant 0 : index
    %c0_7 = arith.constant 0 : index
    %6 = vector.load %arg4[%c0_6, %c0_7] : memref<1x16xf32, #tpu.memory_space<vmem>>, vector<1x16xf32>
    %7 = vector.broadcast %6 : vector<1x16xf32> to vector<16x16xf32>
    %8 = arith.addf %5, %7 : vector<16x16xf32>
    %cst_8 = arith.constant 0.000000e+00 : f32
    %9 = vector.broadcast %cst_8 : f32 to vector<16x16xf32>
    %10 = arith.maximumf %8, %9 : vector<16x16xf32>
    %cst_9 = arith.constant dense<0.000000e+00> : vector<16x16xf32>
    %11 = tpu.matmul %1, %10, %cst_9 {dimension_numbers = #tpu.dot_dimension_numbers<[1], [0], [0], [1], [0, 0, 1, 1], [], []>} : vector<16x16xf32>, vector<16x16xf32>, vector<16x16xf32> -> vector<16x16xf32>
    %12 = tpu.concatenate %11, %10 in 1 : vector<16x16xf32>, vector<16x16xf32> -> vector<16x32xf32>
    %c0_10 = arith.constant 0 : index
    %c0_11 = arith.constant 0 : index
    %13 = vector.load %arg5[%c0_10, %c0_11] : memref<32x32xf32, #tpu.memory_space<vmem>>, vector<32x32xf32>
    %cst_12 = arith.constant dense<0.000000e+00> : vector<16x32xf32>
    %14 = tpu.matmul %12, %13, %cst_12 {dimension_numbers = #tpu.dot_dimension_numbers<[1], [0], [0], [1], [0, 0, 1, 1], [], []>} : vector<16x32xf32>, vector<32x32xf32>, vector<16x32xf32> -> vector<16x32xf32>
    %c0_13 = arith.constant 0 : index
    %c0_14 = arith.constant 0 : index
    %15 = vector.load %arg6[%c0_13, %c0_14] : memref<1x32xf32, #tpu.memory_space<vmem>>, vector<1x32xf32>
    %16 = vector.broadcast %15 : vector<1x32xf32> to vector<16x32xf32>
    %17 = arith.addf %14, %16 : vector<16x32xf32>
    %c0_15 = arith.constant 0 : index
    %c0_16 = arith.constant 0 : index
    %18 = vector.load %arg7[%c0_15, %c0_16] : memref<16x32xf32, #tpu.memory_space<vmem>>, vector<16x32xf32>
    tpu.vector_store %arg7[%c0_15, %c0_16], %17 {strides = array<i32>} : memref<16x32xf32, #tpu.memory_space<vmem>>, vector<16x32xf32>,
    return
  }
  func.func @transform_0(%arg0: i32) -> (i32, i32) {
    %c0_i32 = arith.constant 0 : i32
    %c0_i32_0 = arith.constant 0 : i32
    return %arg0, %c0_i32 : i32, i32
  }
  func.func @transform_1(%arg0: i32) -> (i32, i32) {
    %c0_i32 = arith.constant 0 : i32
    %c0_i32_0 = arith.constant 0 : i32
    %c0_i32_1 = arith.constant 0 : i32
    return %c0_i32, %c0_i32_0 : i32, i32
  }
  func.func @transform_2(%arg0: i32) -> (i32, i32) {
    %c0_i32 = arith.constant 0 : i32
    %c0_i32_0 = arith.constant 0 : i32
    %c0_i32_1 = arith.constant 0 : i32
    return %c0_i32, %c0_i32_0 : i32, i32
  }
  func.func @transform_3(%arg0: i32) -> (i32, i32) {
    %c0_i32 = arith.constant 0 : i32
    %c0_i32_0 = arith.constant 0 : i32
    %c0_i32_1 = arith.constant 0 : i32
    return %c0_i32, %c0_i32_0 : i32, i32
  }
  func.func @transform_4(%arg0: i32) -> (i32, i32) {
    %c0_i32 = arith.constant 0 : i32
    %c0_i32_0 = arith.constant 0 : i32
    %c0_i32_1 = arith.constant 0 : i32
    return %c0_i32, %c0_i32_0 : i32, i32
  }
  func.func @transform_5(%arg0: i32) -> (i32, i32) {
    %c0_i32 = arith.constant 0 : i32
    %c0_i32_0 = arith.constant 0 : i32
    %c0_i32_1 = arith.constant 0 : i32
    return %c0_i32, %c0_i32_0 : i32, i32
  }
  func.func @transform_6(%arg0: i32) -> (i32, i32) {
    %c0_i32 = arith.constant 0 : i32
    %c0_i32_0 = arith.constant 0 : i32
    return %arg0, %c0_i32 : i32, i32
  }
}

</mosaic_0001>

<llo_original>
// kernel: gnn_encoder_forward.1
$region0: #{gnn_encoder_forward.1}
  #allocation0 [shape = 'u32[]', space=smem, size = 0x4, offset = 0x4, fixed_abs, tag = 'smem constant byte address 0x4 - core index']
  #allocation1 [shape = 'u32[144,128]{1,0:T(1,128)}', space=vmem, size = 0x12000, scoped, tag = 'internal scratch']
  %s0 = inlined_call_operand.vmem [shape: f32[16,32], index: 0, kind: input, shape index: {}]
  %s1 = inlined_call_operand.vmem [shape: f32[16,16], index: 1, kind: input, shape index: {}]
  %s2 = inlined_call_operand.vmem [shape: f32[64,16], index: 2, kind: input, shape index: {}]
  %s3 = inlined_call_operand.vmem [shape: f32[1,16], index: 3, kind: input, shape index: {}]
  %s4 = inlined_call_operand.vmem [shape: f32[32,32], index: 4, kind: input, shape index: {}]
  %s5 = inlined_call_operand.vmem [shape: f32[1,32], index: 5, kind: input, shape index: {}]
  %s6 = inlined_call_operand.hbm [shape: f32[16,32], index: 6, kind: output, shape index: {}]
  %s7 = sld [smem:[#allocation0]]
  $region34: #{gnn_encoder_forward.1} parent=0
    _
  %s9 = ssub.s32 1, %s7
  %s10 = scalar_select 0, %s9, %s7
  $region1: #{gnn_encoder_forward.1} parent=0
    #allocation2 [shape = 'u8[8192]{0}', space=vmem, size = 0x2000, scoped, tag = 'output window, operand 0, single buffered']
    #allocation3 [shape = 's32[1]{0}', space=sflag, size = 0x4, scoped, tag = 'scoped memory for gnn_encoder_forward.1']
    %11 = vsyncpa [#allocation3], 0
    // Predicated region
    $region2: #{gnn_encoder_forward.1} parent=1 // pred_check
      _
    $region3: #{gnn_encoder_forward.1} parent=1 // pred_check_branch
      %13 = sbr.rel (0) target = $region5
    $region4: #{gnn_encoder_forward.1} parent=1 // pred_region
      _
    $region5: #{gnn_encoder_forward.1} parent=1 // pred_fallthru
      _
    // Predicated region
    $region6: #{gnn_encoder_forward.1} parent=1 // pred_check
      _
    $region7: #{gnn_encoder_forward.1} parent=1 // pred_check_branch
      %15 = sbr.rel (0) target = $region9
    $region8: #{gnn_encoder_forward.1} parent=1 // pred_region
      _
    $region9: #{gnn_encoder_forward.1} parent=1 // pred_fallthru
      _
    // Predicated region
    $region10: #{gnn_encoder_forward.1} parent=1 // pred_check
      _
    $region11: #{gnn_encoder_forward.1} parent=1 // pred_check_branch
      %17 = sbr.rel (0) target = $region13
    $region12: #{gnn_encoder_forward.1} parent=1 // pred_region
      _
    $region13: #{gnn_encoder_forward.1} parent=1 // pred_fallthru
      _
    // Predicated region
    $region14: #{gnn_encoder_forward.1} parent=1 // pred_check
      _
    $region15: #{gnn_encoder_forward.1} parent=1 // pred_check_branch
      %19 = sbr.rel (0) target = $region17
    $region16: #{gnn_encoder_forward.1} parent=1 // pred_region
      _
    $region17: #{gnn_encoder_forward.1} parent=1 // pred_fallthru
      _
    // Predicated region
    $region18: #{gnn_encoder_forward.1} parent=1 // pred_check
      _
    $region19: #{gnn_encoder_forward.1} parent=1 // pred_check_branch
      %21 = sbr.rel (0) target = $region21
    $region20: #{gnn_encoder_forward.1} parent=1 // pred_region
      _
    $region21: #{gnn_encoder_forward.1} parent=1 // pred_fallthru
      _
    // Predicated region
    $region22: #{gnn_encoder_forward.1} parent=1 // pred_check
      _
    $region23: #{gnn_encoder_forward.1} parent=1 // pred_check_branch
      %23 = sbr.rel (0) target = $region25
    $region24: #{gnn_encoder_forward.1} parent=1 // pred_region
      _
    $region25: #{gnn_encoder_forward.1} parent=1 // pred_fallthru
      _
    %v24 = vld [vmem:[%s0] sm:$0xff]
    %v25 = vld [vmem:[%s0 + $0x8] sm:$0xff]
    %v26 = vld [vmem:[%s1] sm:$0xff]
    %v27 = vld [vmem:[%s1 + $0x8] sm:$0xff]
    %vm28 = vcmask 130048
    %v30 = vsel %vm28, %v26, 0
    %v33 = vsel %vm28, %v27, 0
    %35 = vmatprep.subr.mxu0 0.0
    %36 = vmatpush1.msra.mxu0 0.0
    %37 = vmatprep.subr.mxu0 0.0
    %38 = vmatpush1.msra.mxu0 0.0
    %39 = vmatprep.subr.mxu0 0.0
    %40 = vmatpush1.msra.mxu0 0.0
    %41 = vmatprep.subr.mxu0 0.0
    %42 = vmatpush1.msra.mxu0 0.0
    %43 = vmatprep.subr.mxu0 0.0
    %44 = vmatpush1.msra.mxu0 0.0
    %45 = vmatprep.subr.mxu0 0.0
    %46 = vmatpush1.msra.mxu0 0.0
    %47 = vmatprep.subr.mxu0 0.0
    %48 = vmatpush1.msra.mxu0 0.0
    %49 = vmatprep.subr.mxu0 0.0
    %50 = vmatpush1.msra.mxu0 0.0
    %51 = vmatprep.subr.mxu0 0.0
    %52 = vmatpush1.msra.mxu0 0.0
    %53 = vmatprep.subr.mxu0 0.0
    %54 = vmatpush1.msra.mxu0 0.0
    %55 = vmatprep.subr.mxu0 0.0
    %56 = vmatpush1.msra.mxu0 0.0
    %57 = vmatprep.subr.mxu0 0.0
    %58 = vmatpush1.msra.mxu0 0.0
    %59 = vmatprep.subr.mxu0 0.0
    %60 = vmatpush1.msra.mxu0 0.0
    %61 = vmatprep.subr.mxu0 0.0
    %62 = vmatpush1.msra.mxu0 0.0
    %63 = vmatprep.subr.mxu0 0.0
    %64 = vmatpush1.msra.mxu0 %v25
    %65 = vmatprep.subr.mxu0 0.0
    %66 = vmatpush1.msra.mxu0 %v24
    %67 = vmatprep.subr.mxu0 0.0
    %68 = vmatpush2.msra.mxu0 0.0
    %69 = vmatprep.subr.mxu0 0.0
    %70 = vmatpush2.msra.mxu0 0.0
    %71 = vmatprep.subr.mxu0 0.0
    %72 = vmatpush2.msra.mxu0 0.0
    %73 = vmatprep.subr.mxu0 0.0
    %74 = vmatpush2.msra.mxu0 0.0
    %75 = vmatprep.subr.mxu0 0.0
    %76 = vmatpush2.msra.mxu0 0.0
    %77 = vmatprep.subr.mxu0 0.0
    %78 = vmatpush2.msra.mxu0 0.0
    %79 = vmatprep.subr.mxu0 0.0
    %80 = vmatpush2.msra.mxu0 0.0
    %81 = vmatprep.subr.mxu0 0.0
    %82 = vmatpush2.msra.mxu0 0.0
    %83 = vmatprep.subr.mxu0 0.0
    %84 = vmatpush2.msra.mxu0 0.0
    %85 = vmatprep.subr.mxu0 0.0
    %86 = vmatpush2.msra.mxu0 0.0
    %87 = vmatprep.subr.mxu0 0.0
    %88 = vmatpush2.msra.mxu0 0.0
    %89 = vmatprep.subr.mxu0 0.0
    %90 = vmatpush2.msra.mxu0 0.0
    %91 = vmatprep.subr.mxu0 0.0
    %92 = vmatpush2.msra.mxu0 0.0
    %93 = vmatprep.subr.mxu0 0.0
    %94 = vmatpush2.msra.mxu0 0.0
    %95 = vmatprep.subr.mxu0 0.0
    %96 = vmatpush2.msra.mxu0 0.0
    %97 = vmatprep.subr.mxu0 0.0
    %98 = vmatpush2.msra.mxu0 0.0
    %99 = vmatprep.mubr.f32.mxu0 0.0
    %100 = vmatmul.mubr.f32.gmra.mxu0 %v30
    %v101 = vpop.f32.mrf.mxu0
    %v102 = vadd.f32 0.0, %v101
    %v103 = vpop.f32.mrf.mxu0
    %104 = vmatprep.mubr.f32.mxu0 0.0
    %105 = vmatmul.mubr.f32.gmra.mxu0 %v33
    %v106 = vpop.f32.mrf.mxu0
    %v107 = vadd.f32 0.0, %v106
    %v108 = vpop.f32.mrf.mxu0
    %109 = vdwg.mxu0
    %112 = vrot.lane.b32.xlu0 %v24, 32
    %v113 = vpop.permute.xlu0 %112
    %114 = vrot.lane.b32.xlu0 %v25, 32
    %v115 = vpop.permute.xlu0 %114
    %vm118 = vcmask 261120
    %v119 = vsel %vm118, %v102, %v113
    %v120 = vsel %vm118, %v107, %v115
    %v121 = vld [vmem:[%s2] sm:$0xff]
    %v122 = vld [vmem:[%s2 + $0x8] sm:$0xff]
    %v123 = vld [vmem:[%s2 + $0x10] sm:$0xff]
    %v124 = vld [vmem:[%s2 + $0x18] sm:$0xff]
    %v125 = vld [vmem:[%s2 + $0x20] sm:$0xff]
    %v126 = vld [vmem:[%s2 + $0x28] sm:$0xff]
    %v127 = vld [vmem:[%s2 + $0x30] sm:$0xff]
    %v128 = vld [vmem:[%s2 + $0x38] sm:$0xff]
    %v129 = vld [vmem:[%s3] sm:$0x1]
    %v131 = vlaneseq
    %v132 = vshrl.u32 %v131, 7
    %v133 = vsub.s32 0, %v132
    %v134 = vrot.slane %v129, %v133
    %vm136 = vcmask 523264
    %v138 = vsel %vm136, %v119, 0
    %v141 = vsel %vm136, %v120, 0
    %143 = vmatprep.subr.mxu0 0.0
    %144 = vmatpush1.msra.mxu0 0.0
    %145 = vmatprep.subr.mxu0 0.0
    %146 = vmatpush1.msra.mxu0 0.0
    %147 = vmatprep.subr.mxu0 0.0
    %148 = vmatpush1.msra.mxu0 0.0
    %149 = vmatprep.subr.mxu0 0.0
    %150 = vmatpush1.msra.mxu0 0.0
    %151 = vmatprep.subr.mxu0 0.0
    %152 = vmatpush1.msra.mxu0 0.0
    %153 = vmatprep.subr.mxu0 0.0
    %154 = vmatpush1.msra.mxu0 0.0
    %155 = vmatprep.subr.mxu0 0.0
    %156 = vmatpush1.msra.mxu0 0.0
    %157 = vmatprep.subr.mxu0 0.0
    %158 = vmatpush1.msra.mxu0 0.0
    %159 = vmatprep.subr.mxu0 0.0
    %160 = vmatpush1.msra.mxu0 %v128
    %161 = vmatprep.subr.mxu0 0.0
    %162 = vmatpush1.msra.mxu0 %v127
    %163 = vmatprep.subr.mxu0 0.0
    %164 = vmatpush1.msra.mxu0 %v126
    %165 = vmatprep.subr.mxu0 0.0
    %166 = vmatpush1.msra.mxu0 %v125
    %167 = vmatprep.subr.mxu0 0.0
    %168 = vmatpush1.msra.mxu0 %v124
    %169 = vmatprep.subr.mxu0 0.0
    %170 = vmatpush1.msra.mxu0 %v123
    %171 = vmatprep.subr.mxu0 0.0
    %172 = vmatpush1.msra.mxu0 %v122
    %173 = vmatprep.subr.mxu0 0.0
    %174 = vmatpush1.msra.mxu0 %v121
    %175 = vmatprep.subr.mxu0 0.0
    %176 = vmatpush2.msra.mxu0 0.0
    %177 = vmatprep.subr.mxu0 0.0
    %178 = vmatpush2.msra.mxu0 0.0
    %179 = vmatprep.subr.mxu0 0.0
    %180 = vmatpush2.msra.mxu0 0.0
    %181 = vmatprep.subr.mxu0 0.0
    %182 = vmatpush2.msra.mxu0 0.0
    %183 = vmatprep.subr.mxu0 0.0
    %184 = vmatpush2.msra.mxu0 0.0
    %185 = vmatprep.subr.mxu0 0.0
    %186 = vmatpush2.msra.mxu0 0.0
    %187 = vmatprep.subr.mxu0 0.0
    %188 = vmatpush2.msra.mxu0 0.0
    %189 = vmatprep.subr.mxu0 0.0
    %190 = vmatpush2.msra.mxu0 0.0
    %191 = vmatprep.subr.mxu0 0.0
    %192 = vmatpush2.msra.mxu0 0.0
    %193 = vmatprep.subr.mxu0 0.0
    %194 = vmatpush2.msra.mxu0 0.0
    %195 = vmatprep.subr.mxu0 0.0
    %196 = vmatpush2.msra.mxu0 0.0
    %197 = vmatprep.subr.mxu0 0.0
    %198 = vmatpush2.msra.mxu0 0.0
    %199 = vmatprep.subr.mxu0 0.0
    %200 = vmatpush2.msra.mxu0 0.0
    %201 = vmatprep.subr.mxu0 0.0
    %202 = vmatpush2.msra.mxu0 0.0
    %203 = vmatprep.subr.mxu0 0.0
    %204 = vmatpush2.msra.mxu0 0.0
    %205 = vmatprep.subr.mxu0 0.0
    %206 = vmatpush2.msra.mxu0 0.0
    %207 = vmatprep.mubr.f32.mxu0 0.0
    %208 = vmatmul.mubr.f32.gmra.mxu0 %v138
    %v209 = vpop.f32.mrf.mxu0
    %v210 = vadd.f32 %v134, %v209
    %v211 = vpop.f32.mrf.mxu0
    %212 = vmatprep.mubr.f32.mxu0 0.0
    %213 = vmatmul.mubr.f32.gmra.mxu0 %v141
    %v214 = vpop.f32.mrf.mxu0
    %v215 = vadd.f32 %v134, %v214
    %v216 = vpop.f32.mrf.mxu0
    %217 = vdwg.mxu0
    %v218 = vmax.f32 %v210, 0.0
    %v219 = vmax.f32 %v215, 0.0
    %220 = vmatprep.subr.mxu0 0.0
    %221 = vmatpush1.msra.mxu0 0.0
    %222 = vmatprep.subr.mxu0 0.0
    %223 = vmatpush1.msra.mxu0 0.0
    %224 = vmatprep.subr.mxu0 0.0
    %225 = vmatpush1.msra.mxu0 0.0
    %226 = vmatprep.subr.mxu0 0.0
    %227 = vmatpush1.msra.mxu0 0.0
    %228 = vmatprep.subr.mxu0 0.0
    %229 = vmatpush1.msra.mxu0 0.0
    %230 = vmatprep.subr.mxu0 0.0
    %231 = vmatpush1.msra.mxu0 0.0
    %232 = vmatprep.subr.mxu0 0.0
    %233 = vmatpush1.msra.mxu0 0.0
    %234 = vmatprep.subr.mxu0 0.0
    %235 = vmatpush1.msra.mxu0 0.0
    %236 = vmatprep.subr.mxu0 0.0
    %237 = vmatpush1.msra.mxu0 0.0
    %238 = vmatprep.subr.mxu0 0.0
    %239 = vmatpush1.msra.mxu0 0.0
    %240 = vmatprep.subr.mxu0 0.0
    %241 = vmatpush1.msra.mxu0 0.0
    %242 = vmatprep.subr.mxu0 0.0
    %243 = vmatpush1.msra.mxu0 0.0
    %244 = vmatprep.subr.mxu0 0.0
    %245 = vmatpush1.msra.mxu0 0.0
    %246 = vmatprep.subr.mxu0 0.0
    %247 = vmatpush1.msra.mxu0 0.0
    %248 = vmatprep.subr.mxu0 0.0
    %249 = vmatpush1.msra.mxu0 %v219
    %250 = vmatprep.subr.mxu0 0.0
    %251 = vmatpush1.msra.mxu0 %v218
    %252 = vmatprep.subr.mxu0 0.0
    %253 = vmatpush2.msra.mxu0 0.0
    %254 = vmatprep.subr.mxu0 0.0
    %255 = vmatpush2.msra.mxu0 0.0
    %256 = vmatprep.subr.mxu0 0.0
    %257 = vmatpush2.msra.mxu0 0.0
    %258 = vmatprep.subr.mxu0 0.0
    %259 = vmatpush2.msra.mxu0 0.0
    %260 = vmatprep.subr.mxu0 0.0
    %261 = vmatpush2.msra.mxu0 0.0
    %262 = vmatprep.subr.mxu0 0.0
    %263 = vmatpush2.msra.mxu0 0.0
    %264 = vmatprep.subr.mxu0 0.0
    %265 = vmatpush2.msra.mxu0 0.0
    %266 = vmatprep.subr.mxu0 0.0
    %267 = vmatpush2.msra.mxu0 0.0
    %268 = vmatprep.subr.mxu0 0.0
    %269 = vmatpush2.msra.mxu0 0.0
    %270 = vmatprep.subr.mxu0 0.0
    %271 = vmatpush2.msra.mxu0 0.0
    %272 = vmatprep.subr.mxu0 0.0
    %273 = vmatpush2.msra.mxu0 0.0
    %274 = vmatprep.subr.mxu0 0.0
    %275 = vmatpush2.msra.mxu0 0.0
    %276 = vmatprep.subr.mxu0 0.0
    %277 = vmatpush2.msra.mxu0 0.0
    %278 = vmatprep.subr.mxu0 0.0
    %279 = vmatpush2.msra.mxu0 0.0
    %280 = vmatprep.subr.mxu0 0.0
    %281 = vmatpush2.msra.mxu0 0.0
    %282 = vmatprep.subr.mxu0 0.0
    %283 = vmatpush2.msra.mxu0 0.0
    %284 = vmatprep.mubr.f32.mxu0 0.0
    %285 = vmatmul.mubr.f32.gmra.mxu0 %v30
    %v286 = vpop.f32.mrf.mxu0
    %v287 = vadd.f32 0.0, %v286
    %v288 = vpop.f32.mrf.mxu0
    %289 = vmatprep.mubr.f32.mxu0 0.0
    %290 = vmatmul.mubr.f32.gmra.mxu0 %v33
    %v291 = vpop.f32.mrf.mxu0
    %v292 = vadd.f32 0.0, %v291
    %v293 = vpop.f32.mrf.mxu0
    %294 = vdwg.mxu0
    %297 = vrot.lane.b32.xlu0 %v218, 16
    %v298 = vpop.permute.xlu0 %297
    %299 = vrot.lane.b32.xlu0 %v219, 16
    %v300 = vpop.permute.xlu0 %299
    %v303 = vsel %vm28, %v287, %v298
    %v304 = vsel %vm28, %v292, %v300
    %v305 = vld [vmem:[%s4] sm:$0xff]
    %v306 = vld [vmem:[%s4 + $0x8] sm:$0xff]
    %v307 = vld [vmem:[%s4 + $0x10] sm:$0xff]
    %v308 = vld [vmem:[%s4 + $0x18] sm:$0xff]
    %v309 = vld [vmem:[%s5] sm:$0x1]
    %v311 = vlaneseq
    %v312 = vshrl.u32 %v311, 7
    %v313 = vsub.s32 0, %v312
    %v314 = vrot.slane %v309, %v313
    %v317 = vsel %vm118, %v303, 0
    %v320 = vsel %vm118, %v304, 0
    %322 = vmatprep.subr.mxu0 0.0
    %323 = vmatpush1.msra.mxu0 0.0
    %324 = vmatprep.subr.mxu0 0.0
    %325 = vmatpush1.msra.mxu0 0.0
    %326 = vmatprep.subr.mxu0 0.0
    %327 = vmatpush1.msra.mxu0 0.0
    %328 = vmatprep.subr.mxu0 0.0
    %329 = vmatpush1.msra.mxu0 0.0
    %330 = vmatprep.subr.mxu0 0.0
    %331 = vmatpush1.msra.mxu0 0.0
    %332 = vmatprep.subr.mxu0 0.0
    %333 = vmatpush1.msra.mxu0 0.0
    %334 = vmatprep.subr.mxu0 0.0
    %335 = vmatpush1.msra.mxu0 0.0
    %336 = vmatprep.subr.mxu0 0.0
    %337 = vmatpush1.msra.mxu0 0.0
    %338 = vmatprep.subr.mxu0 0.0
    %339 = vmatpush1.msra.mxu0 0.0
    %340 = vmatprep.subr.mxu0 0.0
    %341 = vmatpush1.msra.mxu0 0.0
    %342 = vmatprep.subr.mxu0 0.0
    %343 = vmatpush1.msra.mxu0 0.0
    %344 = vmatprep.subr.mxu0 0.0
    %345 = vmatpush1.msra.mxu0 0.0
    %346 = vmatprep.subr.mxu0 0.0
    %347 = vmatpush1.msra.mxu0 %v308
    %348 = vmatprep.subr.mxu0 0.0
    %349 = vmatpush1.msra.mxu0 %v307
    %350 = vmatprep.subr.mxu0 0.0
    %351 = vmatpush1.msra.mxu0 %v306
    %352 = vmatprep.subr.mxu0 0.0
    %353 = vmatpush1.msra.mxu0 %v305
    %354 = vmatprep.subr.mxu0 0.0
    %355 = vmatpush2.msra.mxu0 0.0
    %356 = vmatprep.subr.mxu0 0.0
    %357 = vmatpush2.msra.mxu0 0.0
    %358 = vmatprep.subr.mxu0 0.0
    %359 = vmatpush2.msra.mxu0 0.0
    %360 = vmatprep.subr.mxu0 0.0
    %361 = vmatpush2.msra.mxu0 0.0
    %362 = vmatprep.subr.mxu0 0.0
    %363 = vmatpush2.msra.mxu0 0.0
    %364 = vmatprep.subr.mxu0 0.0
    %365 = vmatpush2.msra.mxu0 0.0
    %366 = vmatprep.subr.mxu0 0.0
    %367 = vmatpush2.msra.mxu0 0.0
    %368 = vmatprep.subr.mxu0 0.0
    %369 = vmatpush2.msra.mxu0 0.0
    %370 = vmatprep.subr.mxu0 0.0
    %371 = vmatpush2.msra.mxu0 0.0
    %372 = vmatprep.subr.mxu0 0.0
    %373 = vmatpush2.msra.mxu0 0.0
    %374 = vmatprep.subr.mxu0 0.0
    %375 = vmatpush2.msra.mxu0 0.0
    %376 = vmatprep.subr.mxu0 0.0
    %377 = vmatpush2.msra.mxu0 0.0
    %378 = vmatprep.subr.mxu0 0.0
    %379 = vmatpush2.msra.mxu0 0.0
    %380 = vmatprep.subr.mxu0 0.0
    %381 = vmatpush2.msra.mxu0 0.0
    %382 = vmatprep.subr.mxu0 0.0
    %383 = vmatpush2.msra.mxu0 0.0
    %384 = vmatprep.subr.mxu0 0.0
    %385 = vmatpush2.msra.mxu0 0.0
    %386 = vmatprep.mubr.f32.mxu0 0.0
    %387 = vmatmul.mubr.f32.gmra.mxu0 %v317
    %v388 = vpop.f32.mrf.mxu0
    %v389 = vadd.f32 %v314, %v388
    %v390 = vpop.f32.mrf.mxu0
    %391 = vmatprep.mubr.f32.mxu0 0.0
    %392 = vmatmul.mubr.f32.gmra.mxu0 %v320
    %v393 = vpop.f32.mrf.mxu0
    %v394 = vadd.f32 %v314, %v393
    %v395 = vpop.f32.mrf.mxu0
    %396 = vdwg.mxu0
    %397 = vst.msk [vmem:[#allocation2] sm:$0xff] %vm118, %v389
    %398 = vst.msk [vmem:[#allocation2 + $0x8] sm:$0xff] %vm118, %v394
    // Predicated region
    $region26: #{gnn_encoder_forward.1} parent=1 // pred_check
      _
    $region27: #{gnn_encoder_forward.1} parent=1 // pred_check_branch
      %400 = sbr.rel (0) target = $region29
    $region28: #{gnn_encoder_forward.1} parent=1 // pred_region
      %s402 = ssub.s32 256, 256
      %403 = vsyncadd [#allocation3], %s402
      %s404 = sshll.u32 [#allocation2], 4
      %s405 = int_to_ptr.vmem [resolvable:$true] %s404
      %410 = dma.vmem_to_hbm [thread:$0]  %s405, 256, %s6, [#allocation3], 128, 128, 8
    $region29: #{gnn_encoder_forward.1} parent=1 // pred_fallthru
      _
    // Predicated region
    $region30: #{gnn_encoder_forward.1} parent=1 // pred_check
      _
    $region31: #{gnn_encoder_forward.1} parent=1 // pred_check_branch
      %412 = sbr.rel (0) target = $region33
    $region32: #{gnn_encoder_forward.1} parent=1 // pred_region
      %413 = dma.done [#allocation3], 256
    $region33: #{gnn_encoder_forward.1} parent=1 // pred_fallthru
      _
    %414 = vsyncpa [#allocation3], 1

</llo_original>
